<compile_context>
chip_gen: v5e
topology: v5e:2x2
jax: 0.10.0
libtpu: 0.0.40
codegen_flags: <defaults>
</compile_context>

<pallas_src>
import functools

import jax
import jax.numpy as jnp
from jax import lax
from jax.experimental import pallas as pl
from jax.experimental.pallas import tpu as pltpu


def _ising_kernel(s_ref, jhi_ref, jlo_ref, o_ref):
    # s_ref: (tb, D) states tile in the caller's dtype.
    # jhi_ref / jlo_ref: (D, D) bf16 hi/lo halves of (-J.T)  (sign + transpose
    #   folded in by the wrapper, so no in-kernel negate / transpose).
    # o_ref: (tb, 1) f32 energies.
    s_f32 = s_ref[...].astype(jnp.float32)   # VPU upcast; input DMA stays narrow
    s_bf16 = s_f32.astype(jnp.bfloat16)      # exact for spin-valued states

    # tmp[b, i] = -sum_j s[b, j] * J[i, j]  (== -(s @ J.T)); two native-rate bf16
    # MXU matmuls accumulated in f32 reproduce the f32 J to ~2^-17 relative error.
    tmp = lax.dot_general(
        s_bf16, jhi_ref[...], (((1,), (0,)), ((), ())),
        preferred_element_type=jnp.float32,
    )
    tmp += lax.dot_general(
        s_bf16, jlo_ref[...], (((1,), (0,)), ((), ())),
        preferred_element_type=jnp.float32,
    )

    # E[b] = sum_i s[b, i] * tmp[b, i]   (the energy's minus sign is already in tmp).
    # Each output row depends only on its own input row, so garbage rows of a
    # ragged last tile stay isolated and are sliced off in the wrapper.
    o_ref[...] = jnp.sum(s_f32 * tmp, axis=-1, keepdims=True)


def _round_up(x: int, m: int) -> int:
    return (x + m - 1) // m * m


@functools.partial(jax.jit, static_argnames=("block_b",))
def ising_energy(states: jax.Array, J: jax.Array, *, block_b: int = 2048) -> jax.Array:
    """Pallas TPU implementation of IsingModel.forward.

    Args:
      states: (*batch_shape, D) array, any real/integer dtype (upcast in-kernel).
      J: (D, D) interaction matrix.

    Returns:
      energies of shape (*batch_shape,), float32.
    """
    D = J.shape[0]
    assert J.shape == (D, D)
    assert states.shape[-1] == D
    batch_shape = states.shape[:-1]

    # Keep the caller's (possibly narrow) dtype; the f32 upcast happens in-kernel.
    s2d = states.reshape(-1, D)
    B = s2d.shape[0]

    # Pre-transpose + negate J ONCE in the wrapper (canonical (K, N) RHS, minus
    # sign folded in) and split hi/lo in bf16 for the bf16x2 MXU path.
    njt = -J.astype(jnp.float32).T
    jhi = njt.astype(jnp.bfloat16)
    jlo = (njt - jhi.astype(jnp.float32)).astype(jnp.bfloat16)

    # Batch tile: multiple of the sublane packing for the state dtype; capped at
    # ~ceil(B/4) so the parallel grid has >= 4 steps (>= 2 per v7x TensorCore).
    packing = max(1, 4 // s2d.dtype.itemsize)
    row_align = 8 * packing
    tb = min(
        _round_up(block_b, row_align),
        max(row_align, _round_up(pl.cdiv(B, 4), row_align)),
    )
    if tb >= B:
        tb = B  # single block == full array dims (always layout-legal, any B)
    num_tiles = pl.cdiv(B, tb)

    # VMEM budget: double-buffered state/output tiles + resident bf16 J halves +
    # f32 intermediates headroom; capped at 48 MiB (< v7x's 64 MiB physical VMEM).
    vmem_bytes = (
        2 * tb * D * s2d.dtype.itemsize   # state tiles (double-buffered)
        + 2 * 2 * D * D * 2               # bf16 hi/lo J (constant block index)
        + 2 * tb * 128 * 4                # (tb, 1) f32 output blocks, lane-padded
        + 4 * tb * D * 4                  # f32 intermediates headroom
    )
    vmem_limit = int(min(48 * 1024 * 1024,
                         max(32 * 1024 * 1024, vmem_bytes + (4 << 20))))

    out = pl.pallas_call(
        _ising_kernel,
        out_shape=jax.ShapeDtypeStruct((num_tiles * tb, 1), jnp.float32),
        grid_spec=pltpu.PrefetchScalarGridSpec(
            num_scalar_prefetch=0,
            grid=(num_tiles,),
            in_specs=[
                pl.BlockSpec((tb, D), lambda i: (i, 0)),  # states tile
                pl.BlockSpec((D, D), lambda i: (0, 0)),   # -J^T hi (fetched once)
                pl.BlockSpec((D, D), lambda i: (0, 0)),   # -J^T lo (fetched once)
            ],
            out_specs=pl.BlockSpec((tb, 1), lambda i: (i, 0)),
        ),
        compiler_params=pltpu.CompilerParams(
            dimension_semantics=("parallel",),  # batch grid shards across TCs (v7x)
            vmem_limit_bytes=vmem_limit,
        ),
    )(s2d, jhi, jlo)

    energies = out.reshape(-1)[:B]
    return energies.reshape(batch_shape)


def ising_energy_ref(states, J):
    """Pure-JAX reference matching the PyTorch forward exactly."""
    s = states.astype(jnp.float32)
    tmp = jnp.einsum("...j,ij->...i", s, J.astype(jnp.float32))
    return -(s * tmp).sum(-1)


if __name__ == "__main__":
    key = jax.random.PRNGKey(0)
    k_j, k_s = jax.random.split(key)

    D = 128            # state_shape (lane-aligned)
    batch = (4, 16)    # small batch_shape -> 64 samples, exercises 2 grid tiles

    # Deterministic synthetic parameters / inputs.
    J = jax.random.normal(k_j, (D, D), dtype=jnp.float32) * 0.1
    # Spin states in {-1, +1} passed as int8 (4x less HBM traffic than int32/f32);
    # the f32 upcast happens on the VPU inside the kernel.
    spins = jax.random.bernoulli(k_s, 0.5, batch + (D,))
    states = (2 * spins.astype(jnp.int8) - 1).astype(jnp.int8)

    energies = jax.block_until_ready(ising_energy(states, J))
    ref = ising_energy_ref(states, J)

    assert energies.shape == batch
    assert jnp.allclose(energies, ref, rtol=1e-4, atol=1e-3), (energies, ref)

    print("KERNEL_OK")
</pallas_src>

<mosaic_0001>
module attributes {stable_mosaic.version = 11 : i64} {
  func.func @_ising_kernel(%arg0: i32, %arg1: memref<32x128xi8, #tpu.memory_space<vmem>>, %arg2: memref<128x128xbf16, #tpu.memory_space<vmem>>, %arg3: memref<128x128xbf16, #tpu.memory_space<vmem>>, %arg4: memref<32x1xf32, #tpu.memory_space<vmem>>) attributes {dimension_semantics = [#tpu.dimension_semantics<parallel>], iteration_bounds = array<i64: 2>, scalar_prefetch = 0 : i64, scratch_operands = 0 : i64, tpu.core_type = #tpu.core_type<tc>, window_params = [{transform_indices = @transform_0, window_bounds = array<i64: 32, 128>}, {pipeline_mode = #tpu.pipeline_mode<synchronous>, transform_indices = @transform_1, window_bounds = array<i64: 128, 128>}, {pipeline_mode = #tpu.pipeline_mode<synchronous>, transform_indices = @transform_2, window_bounds = array<i64: 128, 128>}, {transform_indices = @transform_3, window_bounds = array<i64: 32, 1>}]} {
    %c0 = arith.constant 0 : index
    %c0_0 = arith.constant 0 : index
    %0 = vector.load %arg1[%c0, %c0_0] : memref<32x128xi8, #tpu.memory_space<vmem>>, vector<32x128xi8>
    %1 = arith.sitofp %0 : vector<32x128xi8> to vector<32x128xf32>
    %2 = arith.truncf %1 : vector<32x128xf32> to vector<32x128xbf16>
    %c0_1 = arith.constant 0 : index
    %c0_2 = arith.constant 0 : index
    %3 = vector.load %arg2[%c0_1, %c0_2] : memref<128x128xbf16, #tpu.memory_space<vmem>>, vector<128x128xbf16>
    %cst = arith.constant dense<0.000000e+00> : vector<32x128xf32>
    %4 = tpu.matmul %2, %3, %cst {dimension_numbers = #tpu.dot_dimension_numbers<[1], [0], [0], [1], [0, 0, 1, 1], [], []>} : vector<32x128xbf16>, vector<128x128xbf16>, vector<32x128xf32> -> vector<32x128xf32>
    %c0_3 = arith.constant 0 : index
    %c0_4 = arith.constant 0 : index
    %5 = vector.load %arg3[%c0_3, %c0_4] : memref<128x128xbf16, #tpu.memory_space<vmem>>, vector<128x128xbf16>
    %cst_5 = arith.constant dense<0.000000e+00> : vector<32x128xf32>
    %6 = tpu.matmul %2, %5, %cst_5 {dimension_numbers = #tpu.dot_dimension_numbers<[1], [0], [0], [1], [0, 0, 1, 1], [], []>} : vector<32x128xbf16>, vector<128x128xbf16>, vector<32x128xf32> -> vector<32x128xf32>
    %7 = arith.addf %4, %6 : vector<32x128xf32>
    %8 = arith.mulf %1, %7 : vector<32x128xf32>
    %cst_6 = arith.constant dense<0.000000e+00> : vector<32xf32>
    %9 = vector.multi_reduction <add>, %8, %cst_6 [1] : vector<32x128xf32> to vector<32xf32>
    %10 = vector.shape_cast %9 : vector<32xf32> to vector<32x1xf32>
    %c0_7 = arith.constant 0 : index
    %c0_8 = arith.constant 0 : index
    %11 = vector.load %arg4[%c0_7, %c0_8] : memref<32x1xf32, #tpu.memory_space<vmem>>, vector<32x1xf32>
    tpu.vector_store %arg4[%c0_7, %c0_8], %10 {strides = array<i32>} : memref<32x1xf32, #tpu.memory_space<vmem>>, vector<32x1xf32>,
    return
  }
  func.func @transform_0(%arg0: i32) -> (i32, i32) {
    %c0_i32 = arith.constant 0 : i32
    %c0_i32_0 = arith.constant 0 : i32
    return %arg0, %c0_i32 : i32, i32
  }
  func.func @transform_1(%arg0: i32) -> (i32, i32) {
    %c0_i32 = arith.constant 0 : i32
    %c0_i32_0 = arith.constant 0 : i32
    %c0_i32_1 = arith.constant 0 : i32
    return %c0_i32, %c0_i32_0 : i32, i32
  }
  func.func @transform_2(%arg0: i32) -> (i32, i32) {
    %c0_i32 = arith.constant 0 : i32
    %c0_i32_0 = arith.constant 0 : i32
    %c0_i32_1 = arith.constant 0 : i32
    return %c0_i32, %c0_i32_0 : i32, i32
  }
  func.func @transform_3(%arg0: i32) -> (i32, i32) {
    %c0_i32 = arith.constant 0 : i32
    %c0_i32_0 = arith.constant 0 : i32
    return %arg0, %c0_i32 : i32, i32
  }
}

</mosaic_0001>

<llo_original>
// kernel: ising_energy.1
$region0: #{ising_energy.1}
  #allocation0 [shape = 'u32[]', space=smem, size = 0x4, offset = 0x4, fixed_abs, tag = 'smem constant byte address 0x4 - core index']
  #allocation1 [shape = 'u32[72,128]{1,0:T(1,128)}', space=vmem, size = 0x9000, scoped, tag = 'internal scratch']
  %s0 = inlined_call_operand.vmem [shape: s8[64,128], index: 0, kind: input, shape index: {}]
  %s1 = inlined_call_operand.vmem [shape: bf16[128,128], index: 1, kind: input, shape index: {}]
  %s2 = inlined_call_operand.vmem [shape: bf16[128,128], index: 2, kind: input, shape index: {}]
  %s3 = inlined_call_operand.vmem [shape: f32[64,1], index: 3, kind: output, shape index: {}]
  %s4 = sld [smem:[#allocation0]]
  $region45: #{ising_energy.1} parent=0
    _
  %s6 = ssub.s32 1, %s4
  %s7 = scalar_select 0, %s6, %s4
  loop: start=0, step=1, limit=4
  $region2: #{ising_energy.1} parent=0 // loop_pre_header
    _
  $region3: #{ising_energy.1} parent=0 // loop_header
    %s9 = sphi 0, %s13
    %p10 = scmp.ge.s32.totalorder %s9, 4
    %s19 = sphi 0, %s21
    %s22 = sphi 0, %s19
    %s23 = sphi 0, %s22
    %s39 = sphi 0, %s23
    %s43 = sphi 0, %s43
    %s45 = sphi 0, %s43
    %s46 = sphi 0, %s45
    %s60 = sphi 0, %s46
    %s64 = sphi 0, %s64
    %s66 = sphi 0, %s64
    %s67 = sphi 0, %s66
    %s81 = sphi 0, %s67
    %s87 = sphi 0, %s89
    %s90 = sphi 0, %s87
    %s91 = sphi 0, %s90
    %s107 = sphi 0, %s91
  $region4: #{ising_energy.1} parent=0 // loop_header_branch
    %12 = sbr.rel (%p10) target = $region8
  $region5: #{ising_energy.1} parent=0 // loop_body
    %s14 = ssub.s32 %s9, 1
    %s15 = ssub.s32 %s9, 2
    %s16 = sadd.s32 %s9, 1
    %s17 = ssub.s32 %s9, %s16
    %p18 = scmp.eq.s32.totalorder %s17, 0
    %s20 = sadd.s32 %s19, 1
    %s21 = scalar_select %p18, %s19, %s20
    %p24 = pneg %p18
    %p25 = scmp.eq.s32.totalorder %s9, 1
    %p26 = por %p24, %p25
    %p27 = scmp.ne.s32.totalorder %s19, %s22
    %p28 = scmp.eq.s32.totalorder %s9, 0
    %p29 = por %p27, %p28
    %p30 = scmp.ne.s32.totalorder %s19, %s22
    %p31 = scmp.eq.s32.totalorder %s14, 1
    %p32 = por %p30, %p31
    %p33 = scmp.ne.s32.totalorder %s22, %s23
    %p34 = scmp.eq.s32.totalorder %s14, 0
    %p35 = por %p33, %p34
    %p36 = scmp.ne.s32.totalorder %s22, %s23
    %p37 = scmp.eq.s32.totalorder %s15, 1
    %p38 = por %p36, %p37
    %p40 = scmp.ne.s32.totalorder %s23, %s39
    %p41 = scmp.eq.s32.totalorder %s15, 0
    %p42 = por %p40, %p41
    %s44 = sadd.s32 %s43, 1
    %p47 = scmp.eq.s32.totalorder %s9, 1
    %p48 = scmp.ne.s32.totalorder %s43, %s45
    %p49 = scmp.eq.s32.totalorder %s9, 0
    %p50 = por %p48, %p49
    %p51 = scmp.ne.s32.totalorder %s43, %s45
    %p52 = scmp.eq.s32.totalorder %s14, 1
    %p53 = por %p51, %p52
    %p54 = scmp.ne.s32.totalorder %s45, %s46
    %p55 = scmp.eq.s32.totalorder %s14, 0
    %p56 = por %p54, %p55
    %p57 = scmp.ne.s32.totalorder %s45, %s46
    %p58 = scmp.eq.s32.totalorder %s15, 1
    %p59 = por %p57, %p58
    %p61 = scmp.ne.s32.totalorder %s46, %s60
    %p62 = scmp.eq.s32.totalorder %s15, 0
    %p63 = por %p61, %p62
    %s65 = sadd.s32 %s64, 1
    %p68 = scmp.eq.s32.totalorder %s9, 1
    %p69 = scmp.ne.s32.totalorder %s64, %s66
    %p70 = scmp.eq.s32.totalorder %s9, 0
    %p71 = por %p69, %p70
    %p72 = scmp.ne.s32.totalorder %s64, %s66
    %p73 = scmp.eq.s32.totalorder %s14, 1
    %p74 = por %p72, %p73
    %p75 = scmp.ne.s32.totalorder %s66, %s67
    %p76 = scmp.eq.s32.totalorder %s14, 0
    %p77 = por %p75, %p76
    %p78 = scmp.ne.s32.totalorder %s66, %s67
    %p79 = scmp.eq.s32.totalorder %s15, 1
    %p80 = por %p78, %p79
    %p82 = scmp.ne.s32.totalorder %s67, %s81
    %p83 = scmp.eq.s32.totalorder %s15, 0
    %p84 = por %p82, %p83
    %s85 = ssub.s32 %s9, %s16
    %p86 = scmp.eq.s32.totalorder %s85, 0
    %s88 = sadd.s32 %s87, 1
    %s89 = scalar_select %p86, %s87, %s88
    %p92 = pneg %p86
    %p93 = scmp.eq.s32.totalorder %s9, 1
    %p94 = por %p92, %p93
    %p95 = scmp.ne.s32.totalorder %s87, %s90
    %p96 = scmp.eq.s32.totalorder %s9, 0
    %p97 = por %p95, %p96
    %p98 = scmp.ne.s32.totalorder %s87, %s90
    %p99 = scmp.eq.s32.totalorder %s14, 1
    %p100 = por %p98, %p99
    %p101 = scmp.ne.s32.totalorder %s90, %s91
    %p102 = scmp.eq.s32.totalorder %s14, 0
    %p103 = por %p101, %p102
    %p104 = scmp.ne.s32.totalorder %s90, %s91
    %p105 = scmp.eq.s32.totalorder %s15, 1
    %p106 = por %p104, %p105
    %p108 = scmp.ne.s32.totalorder %s91, %s107
    %p109 = scmp.eq.s32.totalorder %s15, 0
    %p110 = por %p108, %p109
    %p111 = scmp.le.s32.totalorder 1, %s9
    %p112 = scmp.lt.s32.totalorder %s9, 3
    %p113 = pnand %p111, %p112
    %p114 = pneg %p113
    // Predicated region
    $region9: #{ising_energy.1} parent=5 // pred_check
      _
    $region10: #{ising_energy.1} parent=5 // pred_check_branch
      %116 = sbr.rel (%p113) target = $region12
    $region11: #{ising_energy.1} parent=5 // pred_region
      %s117 = ssub.s32 %s9, 1
      // Predicated region
      $region13: #{ising_energy.1} parent=11 // pred_check
        %p118 = pneg %p56
      $region14: #{ising_energy.1} parent=11 // pred_check_branch
        %120 = sbr.rel (%p118) target = $region16
      $region15: #{ising_energy.1} parent=11 // pred_region
        _
      $region16: #{ising_energy.1} parent=11 // pred_fallthru
        _
      // Predicated region
      $region17: #{ising_energy.1} parent=11 // pred_check
        %p121 = pneg %p77
      $region18: #{ising_energy.1} parent=11 // pred_check_branch
        %123 = sbr.rel (%p121) target = $region20
      $region19: #{ising_energy.1} parent=11 // pred_region
        _
      $region20: #{ising_energy.1} parent=11 // pred_fallthru
        _
    $region12: #{ising_energy.1} parent=5 // pred_fallthru
      _
    %p124 = scmp.lt.s32.totalorder %s9, 2
    // Predicated region
    $region21: #{ising_energy.1} parent=5 // pred_check
      %p125 = pneg %p124
    $region22: #{ising_energy.1} parent=5 // pred_check_branch
      %127 = sbr.rel (%p125) target = $region24
    $region23: #{ising_energy.1} parent=5 // pred_region
      // Predicated region
      $region25: #{ising_energy.1} parent=23 // pred_check
        %p128 = pneg %p29
      $region26: #{ising_energy.1} parent=23 // pred_check_branch
        %130 = sbr.rel (%p128) target = $region28
      $region27: #{ising_energy.1} parent=23 // pred_region
        %s131 = smul.u32 4, %s9
        %p132 = scmp.lt.s32.totalorder %s131, 7
        %s133 = scalar_select %p132, %s131, 7
        %s134 = smul.addr %s133, 2
        %s135 = scalar_lea.vmem %s0, %s134
        %s136 = smul.u32 4, %s9
      $region28: #{ising_energy.1} parent=23 // pred_fallthru
        _
    $region24: #{ising_energy.1} parent=5 // pred_fallthru
      _
    %p137 = scmp.le.s32.totalorder 1, %s9
    %p138 = scmp.lt.s32.totalorder %s9, 3
    %p139 = pnand %p137, %p138
    %p140 = pneg %p139
    // Predicated region
    $region29: #{ising_energy.1} parent=5 // pred_check
      _
    $region30: #{ising_energy.1} parent=5 // pred_check_branch
      %142 = sbr.rel (%p139) target = $region32
    $region31: #{ising_energy.1} parent=5 // pred_region
      %s143 = ssub.s32 %s9, 1
      %s144 = smul.u32 4, %s14
      %p145 = scmp.lt.s32.totalorder %s144, 7
      %s146 = scalar_select %p145, %s144, 7
      %s147 = smul.addr %s146, 2
      %s148 = scalar_lea.vmem %s0, %s147
      %p149 = pneg %p35
      %p150 = pneg %p32
      %p151 = pneg %p56
      %p152 = pneg %p53
      %p153 = pneg %p77
      %p154 = pneg %p74
      %p155 = pneg %p103
      %p156 = pneg %p100
      %s157 = smul.u32 4, %s14
      %p158 = scmp.lt.s32.totalorder %s157, 7
      %s159 = scalar_select %p158, %s157, 7
      %s160 = smul.addr %s159, 8
      %s161 = scalar_lea.vmem %s3, %s160
      %s162 = smul.u32 4, %s14
      %p163 = scmp.lt.s32.totalorder %s162, 7
      %s164 = scalar_select %p163, %s162, 7
      %s165 = smul.addr %s164, 2
      %s166 = scalar_lea.vmem %s0, %s165
      %s167 = smul.u32 4, %s14
      %s168 = smul.u32 4, %s14
      %p169 = scmp.lt.s32.totalorder %s168, 7
      %s170 = scalar_select %p169, %s168, 7
      %s171 = smul.addr %s170, 8
      %s172 = scalar_lea.vmem %s3, %s171
      %s173 = smul.u32 4, %s14
      %v174 = vld [vmem:[%s166] sm:$0x3]
      %v175 = vld [vmem:[%s166 + $0x2] sm:$0x3]
      %v176 = vld [vmem:[%s166 + $0x4] sm:$0x3]
      %v177 = vld [vmem:[%s166 + $0x6] sm:$0x3]
      %v178 = vunpack.c.0.s8 %v174
      %v179 = vunpack.c.0.s8 %v175
      %v180 = vunpack.c.0.s8 %v176
      %v181 = vunpack.c.0.s8 %v177
      %v182 = vcvt.s32.f32 %v178
      %v183 = vcvt.s32.f32 %v179
      %v184 = vcvt.s32.f32 %v180
      %v185 = vcvt.s32.f32 %v181
      %v186 = vpack.c.bf16 %v183, %v182
      %v187 = vpack.c.bf16 %v185, %v184
      %v188 = vld [vmem:[%s1] sm:$0xf]
      %v189 = vld [vmem:[%s1 + $0x4] sm:$0xf]
      %v190 = vld [vmem:[%s1 + $0x8] sm:$0xf]
      %v191 = vld [vmem:[%s1 + $0xc] sm:$0xf]
      %v192 = vld [vmem:[%s1 + $0x10] sm:$0xf]
      %v193 = vld [vmem:[%s1 + $0x14] sm:$0xf]
      %v194 = vld [vmem:[%s1 + $0x18] sm:$0xf]
      %v195 = vld [vmem:[%s1 + $0x1c] sm:$0xf]
      %v196 = vld [vmem:[%s1 + $0x20] sm:$0xf]
      %v197 = vld [vmem:[%s1 + $0x24] sm:$0xf]
      %v198 = vld [vmem:[%s1 + $0x28] sm:$0xf]
      %v199 = vld [vmem:[%s1 + $0x2c] sm:$0xf]
      %v200 = vld [vmem:[%s1 + $0x30] sm:$0xf]
      %v201 = vld [vmem:[%s1 + $0x34] sm:$0xf]
      %v202 = vld [vmem:[%s1 + $0x38] sm:$0xf]
      %v203 = vld [vmem:[%s1 + $0x3c] sm:$0xf]
      %v204 = vld [vmem:[%s2] sm:$0xf]
      %v205 = vld [vmem:[%s2 + $0x4] sm:$0xf]
      %v206 = vld [vmem:[%s2 + $0x8] sm:$0xf]
      %v207 = vld [vmem:[%s2 + $0xc] sm:$0xf]
      %v208 = vld [vmem:[%s2 + $0x10] sm:$0xf]
      %v209 = vld [vmem:[%s2 + $0x14] sm:$0xf]
      %v210 = vld [vmem:[%s2 + $0x18] sm:$0xf]
      %v211 = vld [vmem:[%s2 + $0x1c] sm:$0xf]
      %v212 = vld [vmem:[%s2 + $0x20] sm:$0xf]
      %v213 = vld [vmem:[%s2 + $0x24] sm:$0xf]
      %v214 = vld [vmem:[%s2 + $0x28] sm:$0xf]
      %v215 = vld [vmem:[%s2 + $0x2c] sm:$0xf]
      %v216 = vld [vmem:[%s2 + $0x30] sm:$0xf]
      %v217 = vld [vmem:[%s2 + $0x34] sm:$0xf]
      %v218 = vld [vmem:[%s2 + $0x38] sm:$0xf]
      %v219 = vld [vmem:[%s2 + $0x3c] sm:$0xf]
      %v236 = vunpack.c.l.b16 %v204
      %v237 = vunpack.c.l.b16 %v205
      %v238 = vunpack.c.l.b16 %v206
      %v239 = vunpack.c.l.b16 %v207
      %v240 = vunpack.c.l.b16 %v208
      %v241 = vunpack.c.l.b16 %v209
      %v242 = vunpack.c.l.b16 %v210
      %v243 = vunpack.c.l.b16 %v211
      %v244 = vunpack.c.l.b16 %v212
      %v245 = vunpack.c.l.b16 %v213
      %v246 = vunpack.c.l.b16 %v214
      %v247 = vunpack.c.l.b16 %v215
      %v248 = vunpack.c.l.b16 %v216
      %v249 = vunpack.c.l.b16 %v217
      %v250 = vunpack.c.l.b16 %v218
      %v251 = vunpack.c.l.b16 %v219
      %v252 = vpack.c.b16 %v237, %v236
      %v253 = vpack.c.b16 %v239, %v238
      %v254 = vpack.c.b16 %v241, %v240
      %v255 = vpack.c.b16 %v243, %v242
      %v256 = vpack.c.b16 %v245, %v244
      %v257 = vpack.c.b16 %v247, %v246
      %v258 = vpack.c.b16 %v249, %v248
      %v259 = vpack.c.b16 %v251, %v250
      %268 = vmatpush.bf16.msra.mxu0 %v259
      %269 = vmatpush.bf16.msra.mxu0 %v258
      %270 = vmatpush.bf16.msra.mxu0 %v257
      %271 = vmatpush.bf16.msra.mxu0 %v256
      %272 = vmatpush.bf16.msra.mxu0 %v255
      %273 = vmatpush.bf16.msra.mxu0 %v254
      %274 = vmatpush.bf16.msra.mxu0 %v253
      %275 = vmatpush.bf16.msra.mxu0 %v252
      %276 = vmatmul.bf16.gmra.mxu0 %v186
      %v277 = vpop.f32.mrf.mxu0
      %v278 = vadd.f32 0.0, %v277
      %v279 = vpop.f32.mrf.mxu0
      %v280 = vadd.f32 0.0, %v279
      %281 = vmatmul.bf16.gmra.mxu0 %v187
      %v282 = vpop.f32.mrf.mxu0
      %v283 = vadd.f32 0.0, %v282
      %v284 = vpop.f32.mrf.mxu0
      %v285 = vadd.f32 0.0, %v284
      %286 = vdwg.mxu0
      %v303 = vunpack.c.l.b16 %v188
      %v304 = vunpack.c.l.b16 %v189
      %v305 = vunpack.c.l.b16 %v190
      %v306 = vunpack.c.l.b16 %v191
      %v307 = vunpack.c.l.b16 %v192
      %v308 = vunpack.c.l.b16 %v193
      %v309 = vunpack.c.l.b16 %v194
      %v310 = vunpack.c.l.b16 %v195
      %v311 = vunpack.c.l.b16 %v196
      %v312 = vunpack.c.l.b16 %v197
      %v313 = vunpack.c.l.b16 %v198
      %v314 = vunpack.c.l.b16 %v199
      %v315 = vunpack.c.l.b16 %v200
      %v316 = vunpack.c.l.b16 %v201
      %v317 = vunpack.c.l.b16 %v202
      %v318 = vunpack.c.l.b16 %v203
      %v319 = vpack.c.b16 %v304, %v303
      %v320 = vpack.c.b16 %v306, %v305
      %v321 = vpack.c.b16 %v308, %v307
      %v322 = vpack.c.b16 %v310, %v309
      %v323 = vpack.c.b16 %v312, %v311
      %v324 = vpack.c.b16 %v314, %v313
      %v325 = vpack.c.b16 %v316, %v315
      %v326 = vpack.c.b16 %v318, %v317
      %335 = vmatpush.bf16.msra.mxu0 %v326
      %336 = vmatpush.bf16.msra.mxu0 %v325
      %337 = vmatpush.bf16.msra.mxu0 %v324
      %338 = vmatpush.bf16.msra.mxu0 %v323
      %339 = vmatpush.bf16.msra.mxu0 %v322
      %340 = vmatpush.bf16.msra.mxu0 %v321
      %341 = vmatpush.bf16.msra.mxu0 %v320
      %342 = vmatpush.bf16.msra.mxu0 %v319
      %343 = vmatmul.bf16.gmra.mxu0 %v186
      %v344 = vpop.f32.mrf.mxu0
      %v345 = vadd.f32 %v278, %v344
      %v346 = vpop.f32.mrf.mxu0
      %v347 = vadd.f32 %v280, %v346
      %348 = vmatmul.bf16.gmra.mxu0 %v187
      %v349 = vpop.f32.mrf.mxu0
      %v350 = vadd.f32 %v283, %v349
      %v351 = vpop.f32.mrf.mxu0
      %v352 = vadd.f32 %v285, %v351
      %353 = vdwg.mxu0
      %v354 = vmul.f32 %v182, %v345
      %v355 = vmul.f32 %v183, %v347
      %v356 = vmul.f32 %v184, %v350
      %v357 = vmul.f32 %v185, %v352
      %358 = vadd.xlane.f32.xlu0 %v354
      %v359 = vpop.xlane.xlu0 %358
      %360 = vadd.xlane.f32.xlu0 %v355
      %v361 = vpop.xlane.xlu0 %360
      %362 = vadd.xlane.f32.xlu0 %v356
      %v363 = vpop.xlane.xlu0 %362
      %364 = vadd.xlane.f32.xlu0 %v357
      %v365 = vpop.xlane.xlu0 %364
      %vm366 = vcmask 7168
      %367 = vst.msk [vmem:[%s172] sm:$0xff] %vm366, %v359
      %368 = vst.msk [vmem:[%s172 + $0x8] sm:$0xff] %vm366, %v361
      %369 = vst.msk [vmem:[%s172 + $0x10] sm:$0xff] %vm366, %v363
      %370 = vst.msk [vmem:[%s172 + $0x18] sm:$0xff] %vm366, %v365
      %s371 = smul.u32 4, %s14
      %p372 = scmp.lt.s32.totalorder %s371, 7
      %s373 = scalar_select %p372, %s371, 7
      %s374 = smul.addr %s373, 8
      %s375 = scalar_lea.vmem %s3, %s374
      // Predicated region
      $region33: #{ising_energy.1} parent=31 // pred_check
        %p376 = pneg %p100
      $region34: #{ising_energy.1} parent=31 // pred_check_branch
        %378 = sbr.rel (%p376) target = $region36
      $region35: #{ising_energy.1} parent=31 // pred_region
        %s379 = smul.u32 4, %s14
      $region36: #{ising_energy.1} parent=31 // pred_fallthru
        _
    $region32: #{ising_energy.1} parent=5 // pred_fallthru
      _
    %p380 = scmp.le.s32.totalorder 2, %s9
    // Predicated region
    $region37: #{ising_energy.1} parent=5 // pred_check
      %p381 = pneg %p380
    $region38: #{ising_energy.1} parent=5 // pred_check_branch
      %383 = sbr.rel (%p381) target = $region40
    $region39: #{ising_energy.1} parent=5 // pred_region
      %s384 = ssub.s32 %s9, 2
      // Predicated region
      $region41: #{ising_energy.1} parent=39 // pred_check
        %p385 = pneg %p106
      $region42: #{ising_energy.1} parent=39 // pred_check_branch
        %387 = sbr.rel (%p385) target = $region44
      $region43: #{ising_energy.1} parent=39 // pred_region
        %s388 = smul.u32 4, %s15
        %p389 = scmp.lt.s32.totalorder %s388, 7
        %s390 = scalar_select %p389, %s388, 7
        %s391 = smul.addr %s390, 8
        %s392 = scalar_lea.vmem %s3, %s391
      $region44: #{ising_energy.1} parent=39 // pred_fallthru
        _
    $region40: #{ising_energy.1} parent=5 // pred_fallthru
      _
  $region6: #{ising_energy.1} parent=0 // loop_footer
    %s13 = sadd.s32 1, %s9
  $region7: #{ising_energy.1} parent=0 // loop_footer_branch
    %8 = sbr.rel target = $region3
  $region8: #{ising_energy.1} parent=0 // loop_exit
    _

</llo_original>
